<compile_context>
chip_gen: v7x
topology: tpu7x:2x2x1
jax: 0.10.0
libtpu: 0.0.40
codegen_flags: <defaults>
</compile_context>

<pallas_src>
import jax
import jax.numpy as jnp
from jax.experimental import pallas as pl
from jax.experimental.pallas import tpu as pltpu


# --------------------------------------------------------------------------
# Kernel: one (tb, tn) output tile; K (contraction) is the trailing grid axis.
# --------------------------------------------------------------------------
def _fused_hops_kernel(x_ref, w_ref, b_ref, o_ref, acc_ref):
    # x_ref  : (tb, tk)  bf16   rel tile
    # w_ref  : (tk, tn)  bf16   fused, pre-transposed weight tile
    # b_ref  : (1,  tn)  f32    fused bias tile
    # o_ref  : (tb, tn)  f32    lane-dense output tile
    # acc_ref: (tb, tn)  f32    VMEM accumulator (persists across K)
    k = pl.program_id(2)

    @pl.when(k == 0)
    def _():
        acc_ref[...] = jnp.zeros_like(acc_ref)

    acc_ref[...] += jnp.dot(x_ref[...], w_ref[...],
                            preferred_element_type=jnp.float32)

    @pl.when(k == pl.num_programs(2) - 1)
    def _():
        o_ref[...] = (acc_ref[...] + b_ref[...]).astype(o_ref.dtype)


# --------------------------------------------------------------------------
# Generation-aware VMEM budgeting and tile selection.
# --------------------------------------------------------------------------
def _vmem_budget():
    cap = 64 * 1024 * 1024  # conservative fallback (v7x per-TC VMEM)
    try:
        info = pltpu.get_tpu_info()
        cap = int(getattr(info, "vmem_capacity_bytes", cap))
    except Exception:
        pass
    budget = int(cap * 0.55)                       # headroom for double buffers
    limit = min(int(cap * 0.8), 96 * 1024 * 1024)  # raise scoped VMEM limit
    return budget, limit


def _choose_tiles(B, N_pad, E_in, x_bytes, w_bytes, out_bytes, budget):
    """Largest multiple-of-128 tn / tk (K full-extent preferred) within budget."""
    tb = B if B <= 256 else 256

    def desc_candidates(full):
        cands = [full]
        for t in (8192, 4096, 2048, 1024, 512, 256, 128):
            if t < full and full % t == 0:
                cands.append(t)
        return cands

    tn_cands = desc_candidates(N_pad)
    tk_cands = desc_candidates(E_in)

    def vmem_use(tn, tk):
        return (2 * tb * tk * x_bytes        # rel tile, double-buffered
                + 2 * tk * tn * w_bytes      # weight tile, double-buffered
                + 2 * tn * 4                 # bias tile, double-buffered
                + 2 * tb * tn * out_bytes    # output tile, double-buffered
                + tb * tn * 4)               # f32 accumulator scratch

    for tn in tn_cands:                      # prefer lane-width first,
        for tk in tk_cands:                  # then contraction depth
            if vmem_use(tn, tk) <= budget:
                return tb, tn, tk
    return tb, tn_cands[-1], tk_cands[-1]


# --------------------------------------------------------------------------
# One-time parameter fusion (hoist out of the per-forward path).
# --------------------------------------------------------------------------
def prepare_fused_params(weights, biases, weight_dtype=jnp.bfloat16):
    """weights: [H, E_out, E_in] (nn.Linear layout), biases: [H, E_out]."""
    H, E_out, E_in = weights.shape
    N = H * E_out
    N_pad = ((N + 127) // 128) * 128
    # Cast BEFORE transposing: the layout shuffle moves bf16, not f32, bytes.
    w = weights.astype(weight_dtype)
    # W_fused[i, h*E_out + o] = weights[h, o, i]  =>  rel @ W_fused == hop outs
    w_fused = jnp.transpose(w, (2, 0, 1)).reshape(E_in, N)
    b_fused = biases.astype(jnp.float32).reshape(1, N)
    if N_pad != N:
        w_fused = jnp.pad(w_fused, ((0, 0), (0, N_pad - N)))
        b_fused = jnp.pad(b_fused, ((0, 0), (0, N_pad - N)))
    meta = dict(H=H, E_out=E_out, E_in=E_in, N=N, N_pad=N_pad)
    return w_fused, b_fused, meta


# --------------------------------------------------------------------------
# Pallas forward returning the fused [B, H*E] slab.
# --------------------------------------------------------------------------
def linear_reformulator_fused(rel, w_fused, b_fused, meta, *,
                              input_dtype=jnp.bfloat16,
                              out_dtype=jnp.float32):
    E_in, N, N_pad = meta["E_in"], meta["N"], meta["N_pad"]
    B = rel.shape[0]
    assert rel.shape[1] == E_in

    x = rel.astype(input_dtype)
    x_bytes = jnp.dtype(input_dtype).itemsize
    w_bytes = jnp.dtype(w_fused.dtype).itemsize
    out_bytes = jnp.dtype(out_dtype).itemsize

    budget, vmem_limit = _vmem_budget()
    tb, tn, tk = _choose_tiles(B, N_pad, E_in,
                               x_bytes, w_bytes, out_bytes, budget)

    B_pad = ((B + tb - 1) // tb) * tb
    if B_pad != B:
        x = jnp.pad(x, ((0, B_pad - B), (0, 0)))

    grid = (B_pad // tb, N_pad // tn, E_in // tk)   # reduction axis last

    cost = pl.CostEstimate(
        flops=2 * B_pad * E_in * N_pad,
        transcendentals=0,
        bytes_accessed=(x_bytes * B_pad * E_in
                        + w_bytes * E_in * N_pad
                        + 4 * N_pad
                        + out_bytes * B_pad * N_pad),
    )

    out = pl.pallas_call(
        _fused_hops_kernel,
        out_shape=jax.ShapeDtypeStruct((B_pad, N_pad), out_dtype),
        grid_spec=pltpu.PrefetchScalarGridSpec(
            num_scalar_prefetch=0,
            grid=grid,
            in_specs=[
                pl.BlockSpec((tb, tk), lambda i, j, k: (i, k)),   # rel tile
                pl.BlockSpec((tk, tn), lambda i, j, k: (k, j)),   # fused W tile
                pl.BlockSpec((1, tn), lambda i, j, k: (0, j)),    # fused bias
            ],
            out_specs=pl.BlockSpec((tb, tn), lambda i, j, k: (i, j)),
            scratch_shapes=[pltpu.VMEM((tb, tn), jnp.float32)],
        ),
        compiler_params=pltpu.CompilerParams(
            dimension_semantics=("parallel", "parallel", "arbitrary"),
            vmem_limit_bytes=vmem_limit,
        ),
        cost_estimate=cost,
    )(x, w_fused, b_fused)

    return out[:B, :N]


# --------------------------------------------------------------------------
# List-of-hops API matching LinearReformulator.forward.
# --------------------------------------------------------------------------
_SMALL_PROBLEM_FLOPS = 1 << 24   # below ~16.7 Mflop, XLA einsum wins on dispatch


def linear_reformulator_forward(rel, weights, biases, *,
                                force_pallas=False,
                                input_dtype=jnp.bfloat16,
                                out_dtype=jnp.float32):
    H, E_out, E_in = weights.shape
    B = rel.shape[0]
    flops = 2 * B * E_in * H * E_out

    if not force_pallas and flops < _SMALL_PROBLEM_FLOPS:
        # Small-problem fallback: pallas launch/per-step overhead dominates.
        outs = jnp.einsum("be,hoe->hbo", rel, weights) + biases[:, None, :]
        return [outs[h] for h in range(H)]

    # NOTE: when weights are static across calls, prepare_fused_params should
    # be precomputed once and reused by the caller; done inline here for API
    # parity with the PyTorch module.
    w_fused, b_fused, meta = prepare_fused_params(weights, biases,
                                                  weight_dtype=input_dtype)
    slab = linear_reformulator_fused(rel, w_fused, b_fused, meta,
                                     input_dtype=input_dtype,
                                     out_dtype=out_dtype)
    # Prefer consuming the fused slab directly downstream; splitting here only
    # to match the List[Tensor] API of the original module.
    return [slab[:, h * E_out:(h + 1) * E_out] for h in range(H)]


# --------------------------------------------------------------------------
# Demo / self-test.
# --------------------------------------------------------------------------
def init_params(key, nb_hops, embedding_size,
                init_name="uniform", lower_bound=-1.0, upper_bound=1.0):
    """Deterministic synthetic init mirroring the PyTorch module's __init__."""
    kw, kb = jax.random.split(key)
    if init_name == "uniform":
        weights = jax.random.uniform(
            kw, (nb_hops, embedding_size, embedding_size),
            minval=lower_bound, maxval=upper_bound, dtype=jnp.float32)
    elif init_name == "normal":
        weights = jax.random.normal(
            kw, (nb_hops, embedding_size, embedding_size), dtype=jnp.float32)
    else:
        bound_w = 1.0 / (embedding_size ** 0.5)
        weights = jax.random.uniform(
            kw, (nb_hops, embedding_size, embedding_size),
            minval=-bound_w, maxval=bound_w, dtype=jnp.float32)
    bound_b = 1.0 / (embedding_size ** 0.5)   # nn.Linear default bias init
    biases = jax.random.uniform(
        kb, (nb_hops, embedding_size),
        minval=-bound_b, maxval=bound_b, dtype=jnp.float32)
    return weights, biases


if __name__ == "__main__":
    nb_hops = 3
    embedding_size = 32
    batch = 8

    key = jax.random.PRNGKey(0)
    k_rel, k_params = jax.random.split(key)

    rel = jax.random.normal(k_rel, (batch, embedding_size), dtype=jnp.float32)
    weights, biases = init_params(k_params, nb_hops, embedding_size,
                                  init_name="uniform",
                                  lower_bound=-1.0, upper_bound=1.0)

    # force_pallas=True so the Pallas kernel is exercised even at demo shapes.
    outs = linear_reformulator_forward(rel, weights, biases, force_pallas=True)
    outs = [jax.block_until_ready(o) for o in outs]

    # Pure-JAX reference (y_h = rel @ W_h.T + b_h).  Tolerance loosened for
    # bf16 operands (accumulation is f32); comfortable at E=32, U(-1,1) init.
    refs = [rel @ weights[h].T + biases[h] for h in range(nb_hops)]
    for o, r in zip(outs, refs):
        assert o.shape == (batch, embedding_size), o.shape
        err = float(jnp.max(jnp.abs(o - r)))
        assert jnp.allclose(o, r, atol=5e-2, rtol=5e-2), err

    print("KERNEL_OK")
</pallas_src>

<mosaic_0001>
module attributes {stable_mosaic.version = 11 : i64} {
  func.func @_fused_hops_kernel(%arg0: i32, %arg1: i32, %arg2: i32, %arg3: memref<8x32xbf16, #tpu.memory_space<vmem>>, %arg4: memref<32x128xbf16, #tpu.memory_space<vmem>>, %arg5: memref<1x128xf32, #tpu.memory_space<vmem>>, %arg6: memref<8x128xf32, #tpu.memory_space<vmem>>, %arg7: memref<8x128xf32, #tpu.memory_space<vmem>>) attributes {dimension_semantics = [#tpu.dimension_semantics<parallel>, #tpu.dimension_semantics<parallel>, #tpu.dimension_semantics<arbitrary>], iteration_bounds = array<i64: 1, 1, 1>, scalar_prefetch = 0 : i64, scratch_operands = 1 : i64, tpu.core_type = #tpu.core_type<tc>, window_params = [{transform_indices = @transform_0, window_bounds = array<i64: 8, 32>}, {transform_indices = @transform_1, window_bounds = array<i64: 32, 128>}, {transform_indices = @transform_2, window_bounds = array<i64: 1, 128>}, {transform_indices = @transform_3, window_bounds = array<i64: 8, 128>}]} {
    %c0_i32 = arith.constant 0 : i32
    %0 = arith.cmpi eq, %arg2, %c0_i32 : i32
    %1 = arith.extui %0 : i1 to i32
    %c0_i32_0 = arith.constant 0 : i32
    %2 = arith.cmpi ne, %1, %c0_i32_0 : i32
    scf.if %2 {
      %cst_10 = arith.constant 0.000000e+00 : f32
      %12 = vector.broadcast %cst_10 : f32 to vector<8x128xf32>
      %c0_11 = arith.constant 0 : index
      %c0_12 = arith.constant 0 : index
      %13 = vector.load %arg7[%c0_11, %c0_12] : memref<8x128xf32, #tpu.memory_space<vmem>>, vector<8x128xf32>
      tpu.vector_store %arg7[%c0_11, %c0_12], %12 {strides = array<i32>} : memref<8x128xf32, #tpu.memory_space<vmem>>, vector<8x128xf32>,
    } else {
    }
    %c0 = arith.constant 0 : index
    %c0_1 = arith.constant 0 : index
    %3 = vector.load %arg7[%c0, %c0_1] : memref<8x128xf32, #tpu.memory_space<vmem>>, vector<8x128xf32>
    %c0_2 = arith.constant 0 : index
    %c0_3 = arith.constant 0 : index
    %4 = vector.load %arg3[%c0_2, %c0_3] : memref<8x32xbf16, #tpu.memory_space<vmem>>, vector<8x32xbf16>
    %c0_4 = arith.constant 0 : index
    %c0_5 = arith.constant 0 : index
    %5 = vector.load %arg4[%c0_4, %c0_5] : memref<32x128xbf16, #tpu.memory_space<vmem>>, vector<32x128xbf16>
    %cst = arith.constant dense<0.000000e+00> : vector<8x128xf32>
    %6 = tpu.matmul %4, %5, %cst {dimension_numbers = #tpu.dot_dimension_numbers<[1], [0], [0], [1], [0, 0, 1, 1], [], []>} : vector<8x32xbf16>, vector<32x128xbf16>, vector<8x128xf32> -> vector<8x128xf32>
    %7 = arith.addf %3, %6 : vector<8x128xf32>
    %c0_6 = arith.constant 0 : index
    %c0_7 = arith.constant 0 : index
    %8 = vector.load %arg7[%c0_6, %c0_7] : memref<8x128xf32, #tpu.memory_space<vmem>>, vector<8x128xf32>
    tpu.vector_store %arg7[%c0_6, %c0_7], %7 {strides = array<i32>} : memref<8x128xf32, #tpu.memory_space<vmem>>, vector<8x128xf32>,
    %c0_i32_8 = arith.constant 0 : i32
    %9 = arith.cmpi eq, %arg2, %c0_i32_8 : i32
    %10 = arith.extui %9 : i1 to i32
    %c0_i32_9 = arith.constant 0 : i32
    %11 = arith.cmpi ne, %10, %c0_i32_9 : i32
    scf.if %11 {
      %c0_10 = arith.constant 0 : index
      %c0_11 = arith.constant 0 : index
      %12 = vector.load %arg7[%c0_10, %c0_11] : memref<8x128xf32, #tpu.memory_space<vmem>>, vector<8x128xf32>
      %c0_12 = arith.constant 0 : index
      %c0_13 = arith.constant 0 : index
      %13 = vector.load %arg5[%c0_12, %c0_13] : memref<1x128xf32, #tpu.memory_space<vmem>>, vector<1x128xf32>
      %14 = vector.broadcast %13 : vector<1x128xf32> to vector<8x128xf32>
      %15 = arith.addf %12, %14 : vector<8x128xf32>
      %c0_14 = arith.constant 0 : index
      %c0_15 = arith.constant 0 : index
      %16 = vector.load %arg6[%c0_14, %c0_15] : memref<8x128xf32, #tpu.memory_space<vmem>>, vector<8x128xf32>
      tpu.vector_store %arg6[%c0_14, %c0_15], %15 {strides = array<i32>} : memref<8x128xf32, #tpu.memory_space<vmem>>, vector<8x128xf32>,
    } else {
    }
    return
  }
  func.func @transform_0(%arg0: i32, %arg1: i32, %arg2: i32) -> (i32, i32) {
    %c0_i32 = arith.constant 0 : i32
    return %arg0, %arg2 : i32, i32
  }
  func.func @transform_1(%arg0: i32, %arg1: i32, %arg2: i32) -> (i32, i32) {
    %c0_i32 = arith.constant 0 : i32
    return %arg2, %arg1 : i32, i32
  }
  func.func @transform_2(%arg0: i32, %arg1: i32, %arg2: i32) -> (i32, i32) {
    %c0_i32 = arith.constant 0 : i32
    %c0_i32_0 = arith.constant 0 : i32
    return %c0_i32, %arg1 : i32, i32
  }
  func.func @transform_3(%arg0: i32, %arg1: i32, %arg2: i32) -> (i32, i32) {
    %c0_i32 = arith.constant 0 : i32
    return %arg0, %arg1 : i32, i32
  }
}

</mosaic_0001>

<llo_original>
// kernel: tpu_custom_call.1
$region0: #{tpu_custom_call.1}
  #allocation0 [shape = 'u32[]', space=smem, size = 0x4, offset = 0x4, fixed_abs, tag = 'smem constant byte address 0x4 - core index']
  #allocation1 [shape = 'u32[144,128]{1,0:T(1,128)}', space=vmem, size = 0x12000, scoped, tag = 'internal scratch']
  #allocation2 [shape = 'f32[8,128]{1,0:T(8,128)}', space=vmem, size = 0x1000, scoped, tag = 'scratch operand']
  %s0 = inlined_call_operand.hbm [shape: bf16[8,32], index: 0, kind: input, shape index: {}]
  %s1 = inlined_call_operand.hbm [shape: bf16[32,128], index: 1, kind: input, shape index: {}]
  %s2 = inlined_call_operand.vmem [shape: f32[1,128], index: 2, kind: input, shape index: {}]
  %s3 = inlined_call_operand.hbm [shape: f32[8,128], index: 3, kind: output, shape index: {}]
  %s4 = sld [smem:[#allocation0]]
  $region38: #{tpu_custom_call.1} parent=0
    _
  %s6 = ssub.s32 1, %s4
  %s7 = scalar_select 0, %s6, %s4
  $region1: #{tpu_custom_call.1} parent=0
    #allocation3 [shape = 'u8[2048]{0}', space=vmem, size = 0x800, scoped, tag = 'input window, operand 0, single buffered']
    #allocation4 [shape = 's32[1]{0}', space=sflag, size = 0x4, scoped, tag = 'scoped memory for tpu_custom_call.1']
    #allocation5 [shape = 's32[1]{0}', space=sflag, size = 0x4, scoped, tag = 'scoped memory for tpu_custom_call.1']
    #allocation6 [shape = 'u8[8192]{0}', space=vmem, size = 0x2000, scoped, tag = 'input window, operand 1, single buffered']
    #allocation7 [shape = 's32[1]{0}', space=sflag, size = 0x4, scoped, tag = 'scoped memory for tpu_custom_call.1']
    #allocation8 [shape = 'u8[4096]{0}', space=vmem, size = 0x1000, scoped, tag = 'output window, operand 0, single buffered']
    %8 = vsyncpa [#allocation4], 0
    %9 = vsyncpa [#allocation7], 0
    %10 = vsyncpa [#allocation5], 0
    // Predicated region
    $region2: #{tpu_custom_call.1} parent=1 // pred_check
      _
    $region3: #{tpu_custom_call.1} parent=1 // pred_check_branch
      %12 = sbr.rel (0) target = $region5
    $region4: #{tpu_custom_call.1} parent=1 // pred_region
      %s14 = ssub.s32 64, 64
      %15 = vsyncadd [#allocation4], %s14
      %s17 = sshll.u32 [#allocation3], 4
      %s18 = int_to_ptr.vmem [resolvable:$true] %s17
      %20 = dma.hbm_to_vmem [thread:$0]  %s0, 64, %s18, [#allocation4]
    $region5: #{tpu_custom_call.1} parent=1 // pred_fallthru
      _
    // Predicated region
    $region6: #{tpu_custom_call.1} parent=1 // pred_check
      _
    $region7: #{tpu_custom_call.1} parent=1 // pred_check_branch
      %22 = sbr.rel (0) target = $region9
    $region8: #{tpu_custom_call.1} parent=1 // pred_region
      %s24 = ssub.s32 256, 256
      %25 = vsyncadd [#allocation7], %s24
      %s26 = sshll.u32 [#allocation6], 4
      %s27 = int_to_ptr.vmem [resolvable:$true] %s26
      %32 = dma.hbm_to_vmem [thread:$0]  %s1, 256, %s27, [#allocation7], 64, 64, 4
    $region9: #{tpu_custom_call.1} parent=1 // pred_fallthru
      _
    // Predicated region
    $region10: #{tpu_custom_call.1} parent=1 // pred_check
      _
    $region11: #{tpu_custom_call.1} parent=1 // pred_check_branch
      %34 = sbr.rel (0) target = $region13
    $region12: #{tpu_custom_call.1} parent=1 // pred_region
      _
    $region13: #{tpu_custom_call.1} parent=1 // pred_fallthru
      _
    // Predicated region
    $region14: #{tpu_custom_call.1} parent=1 // pred_check
      _
    $region15: #{tpu_custom_call.1} parent=1 // pred_check_branch
      %36 = sbr.rel (0) target = $region17
    $region16: #{tpu_custom_call.1} parent=1 // pred_region
      %37 = dma.done [#allocation4], 64
    $region17: #{tpu_custom_call.1} parent=1 // pred_fallthru
      _
    // Predicated region
    $region18: #{tpu_custom_call.1} parent=1 // pred_check
      _
    $region19: #{tpu_custom_call.1} parent=1 // pred_check_branch
      %39 = sbr.rel (0) target = $region21
    $region20: #{tpu_custom_call.1} parent=1 // pred_region
      %40 = dma.done [#allocation7], 256
    $region21: #{tpu_custom_call.1} parent=1 // pred_fallthru
      _
    %p42 = scmp.eq.s32.totalorder 0, 0
    // Predicated region
    $region22: #{tpu_custom_call.1} parent=1 // pred_check
      %p43 = pneg %p42
    $region23: #{tpu_custom_call.1} parent=1 // pred_check_branch
      %45 = sbr.rel (%p43) target = $region25
    $region24: #{tpu_custom_call.1} parent=1 // pred_region
      %46 = vst [vmem:[#allocation2] sm:$0xff] 0.0
    $region25: #{tpu_custom_call.1} parent=1 // pred_fallthru
      _
    %v47 = vld [vmem:[#allocation2] sm:$0xff]
    %v48 = vld [vmem:[#allocation3] sm:$0xf]
    %v49 = vld [vmem:[#allocation6] sm:$0xf]
    %v50 = vld [vmem:[#allocation6 + $0x4] sm:$0xf]
    %v51 = vld [vmem:[#allocation6 + $0x8] sm:$0xf]
    %v52 = vld [vmem:[#allocation6 + $0xc] sm:$0xf]
    %v57 = vunpack.c.l.b16 %v49
    %v58 = vunpack.c.l.b16 %v50
    %v59 = vunpack.c.l.b16 %v51
    %v60 = vunpack.c.l.b16 %v52
    %v61 = vpack.c.b16 %v58, %v57
    %v62 = vpack.c.b16 %v60, %v59
    %vm65 = vcmask 261120
    %v67 = vsel %vm65, %v48, 0
    %69 = vmatprep.subr.bf16.mxu0 0
    %70 = vmatpush1.bf16.msra.mxu0 %v61
    %71 = vmatprep.subr.bf16.mxu0 0
    %72 = vmatpush1.bf16.msra.mxu0 %v62
    %73 = vmatprep.subr.bf16.mxu0 0
    %74 = vmatpush1.bf16.msra.mxu0 0
    %75 = vmatprep.subr.bf16.mxu0 0
    %76 = vmatpush1.bf16.msra.mxu0 0
    %77 = vmatprep.subr.bf16.mxu0 0
    %78 = vmatpush1.bf16.msra.mxu0 0
    %79 = vmatprep.subr.bf16.mxu0 0
    %80 = vmatpush1.bf16.msra.mxu0 0
    %81 = vmatprep.subr.bf16.mxu0 0
    %82 = vmatpush1.bf16.msra.mxu0 0
    %83 = vmatprep.subr.bf16.mxu0 0
    %84 = vmatpush1.bf16.msra.mxu0 0
    %85 = vmatprep.subr.bf16.mxu0 0
    %86 = vmatpush1.bf16.msra.mxu0 0
    %87 = vmatprep.subr.bf16.mxu0 0
    %88 = vmatpush1.bf16.msra.mxu0 0
    %89 = vmatprep.subr.bf16.mxu0 0
    %90 = vmatpush1.bf16.msra.mxu0 0
    %91 = vmatprep.subr.bf16.mxu0 0
    %92 = vmatpush1.bf16.msra.mxu0 0
    %93 = vmatprep.subr.bf16.mxu0 0
    %94 = vmatpush1.bf16.msra.mxu0 0
    %95 = vmatprep.subr.bf16.mxu0 0
    %96 = vmatpush1.bf16.msra.mxu0 0
    %97 = vmatprep.subr.bf16.mxu0 0
    %98 = vmatpush1.bf16.msra.mxu0 0
    %99 = vmatprep.subr.bf16.mxu0 0
    %100 = vmatpush1.bf16.msra.mxu0 0
    %101 = vmatprep.mubr.bf16.mxu0 0
    %102 = vmatmul.mubr.bf16.gmra.mrb[0].mxu0 %v67
    %v103 = vpop.f32.mrb[0].mxu0
    %v104 = vadd.f32 0.0, %v103
    %v105 = vpop.f32.mrb[0].mxu0
    %v106 = vpop.f32.mrb[0].mxu0
    %v107 = vpop.f32.mrb[0].mxu0
    %108 = vdwg.mxu0
    %v109 = vadd.f32 %v47, %v104
    %110 = vst [vmem:[#allocation2] sm:$0xff] %v109
    // Predicated region
    $region26: #{tpu_custom_call.1} parent=1 // pred_check
      %p111 = pneg %p42
    $region27: #{tpu_custom_call.1} parent=1 // pred_check_branch
      %113 = sbr.rel (%p111) target = $region29
    $region28: #{tpu_custom_call.1} parent=1 // pred_region
      %v114 = vld [vmem:[#allocation2] sm:$0xff]
      %v115 = vld [vmem:[%s2] sm:$0x1]
      %v117 = vlaneseq
      %v118 = vshrl.u32 %v117, 7
      %v119 = vsub.s32 0, %v118
      %v120 = vrot.slane %v115, %v119
      %v122 = vadd.f32 %v114, %v120
      %123 = vst [vmem:[#allocation8] sm:$0xff] %v122
    $region29: #{tpu_custom_call.1} parent=1 // pred_fallthru
      _
    // Predicated region
    $region30: #{tpu_custom_call.1} parent=1 // pred_check
      _
    $region31: #{tpu_custom_call.1} parent=1 // pred_check_branch
      %125 = sbr.rel (0) target = $region33
    $region32: #{tpu_custom_call.1} parent=1 // pred_region
      %s127 = ssub.s32 128, 128
      %128 = vsyncadd [#allocation5], %s127
      %s130 = sshll.u32 [#allocation8], 4
      %s131 = int_to_ptr.vmem [resolvable:$true] %s130
      %133 = dma.vmem_to_hbm [thread:$0]  %s131, 128, %s3, [#allocation5]
    $region33: #{tpu_custom_call.1} parent=1 // pred_fallthru
      _
    // Predicated region
    $region34: #{tpu_custom_call.1} parent=1 // pred_check
      _
    $region35: #{tpu_custom_call.1} parent=1 // pred_check_branch
      %135 = sbr.rel (0) target = $region37
    $region36: #{tpu_custom_call.1} parent=1 // pred_region
      %136 = dma.done [#allocation5], 128
    $region37: #{tpu_custom_call.1} parent=1 // pred_fallthru
      _
    %137 = vsyncpa [#allocation4], 1
    %138 = vsyncpa [#allocation7], 1
    %139 = vsyncpa [#allocation5], 1

</llo_original>
